<compile_context>
chip_gen: v7x
topology: tpu7x:2x2x1
jax: 0.10.0
libtpu: 0.0.40
codegen_flags: <defaults>
</compile_context>

<pallas_src>
import functools

import jax
import jax.numpy as jnp
from jax import lax
from jax.experimental import pallas as pl
from jax.experimental.pallas import tpu as pltpu


# ----------------------------------------------------------------------------
# Tiling helpers
# ----------------------------------------------------------------------------
def _round_up(x, m):
    return ((x + m - 1) // m) * m


def _pick_sublane_tile(dim, max_tile=256):
    """Largest multiple-of-8 tile <= max_tile that divides `dim` (dim % 8 == 0)."""
    best = 8
    for t in range(8, min(max_tile, dim) + 1, 8):
        if dim % t == 0:
            best = t
    return best


def _pick_lane_tile(dim, max_tile=512):
    """Largest 128-multiple tile <= max_tile dividing dim; else the full dim
    (a full-extent block is always a legal block size)."""
    if dim % 128 == 0:
        for c in (max_tile, 256, 128):
            if c <= dim and dim % c == 0:
                return c
    return dim


def _pick_seq_tile(n, max_tile=512):
    """Largest multiple-of-8 divisor of n that is <= max_tile; else n (full)."""
    best = n
    for t in range(8, min(max_tile, n) + 1, 8):
        if n % t == 0:
            best = t
    return best


def _clamp_vmem(nbytes):
    # Keep <= 48 MiB so 2-deep buffering stays alive even on v7x (64 MiB VMEM).
    return int(min(max(nbytes, 8 << 20), 48 << 20))


# ----------------------------------------------------------------------------
# Kernel A: fused k/v/q projections (all heads at once, one launch)
# ----------------------------------------------------------------------------
def _proj_kernel(xk_ref, xv_ref, xq_ref, wk_ref, wv_ref, wq_ref,
                 yk_ref, yv_ref, yq_ref, acck, accv, accq):
    @pl.when(pl.program_id(2) == 0)
    def _init():
        acck[...] = jnp.zeros_like(acck)
        accv[...] = jnp.zeros_like(accv)
        accq[...] = jnp.zeros_like(accq)

    acck[...] += jnp.dot(xk_ref[...], wk_ref[...], preferred_element_type=jnp.float32)
    accv[...] += jnp.dot(xv_ref[...], wv_ref[...], preferred_element_type=jnp.float32)
    accq[...] += jnp.dot(xq_ref[...], wq_ref[...], preferred_element_type=jnp.float32)

    @pl.when(pl.program_id(2) == pl.num_programs(2) - 1)
    def _finalize():
        yk_ref[...] = acck[...].astype(yk_ref.dtype)
        yv_ref[...] = accv[...].astype(yv_ref.dtype)
        yq_ref[...] = accq[...].astype(yq_ref.dtype)


def fused_projections(xk, xv, xq, wk_t, wv_t, wq_t, *, out_dtype=None):
    """x*: (M, K) activations.  w*_t: (K, N) pre-transposed, head-fused weights
    (head h occupies output columns [h*hidden, (h+1)*hidden)).  Returns
    (yk, yv, yq), each (M, N)."""
    M, K = xq.shape
    Kw, N = wq_t.shape
    assert K == Kw, (K, Kw)
    out_dtype = out_dtype or xq.dtype

    Mp = _round_up(M, 8)
    tm = _pick_sublane_tile(Mp, 256)
    tn = _pick_lane_tile(N, 512)
    tk = _pick_lane_tile(K, 512)

    if Mp != M:  # at most 7 rows of padding; weights are never padded per-call
        pad = ((0, Mp - M), (0, 0))
        xk, xv, xq = jnp.pad(xk, pad), jnp.pad(xv, pad), jnp.pad(xq, pad)

    grid = (Mp // tm, N // tn, K // tk)

    itemsize = jnp.dtype(xq.dtype).itemsize
    vmem_limit = _clamp_vmem(
        2 * 3 * (tm * tk + tk * tn + tm * tn) * itemsize  # double-buffered in/out
        + 3 * tm * tn * 4                                 # f32 accumulators
        + (4 << 20))                                      # headroom

    cost = pl.CostEstimate(
        flops=3 * 2 * Mp * N * K,
        transcendentals=0,
        bytes_accessed=3 * (Mp * K + K * N + Mp * N) * itemsize,
    )

    yk, yv, yq = pl.pallas_call(
        _proj_kernel,
        out_shape=(jax.ShapeDtypeStruct((Mp, N), out_dtype),
                   jax.ShapeDtypeStruct((Mp, N), out_dtype),
                   jax.ShapeDtypeStruct((Mp, N), out_dtype)),
        grid_spec=pltpu.PrefetchScalarGridSpec(
            num_scalar_prefetch=0,
            grid=grid,
            in_specs=[
                pl.BlockSpec((tm, tk), lambda i, j, kk: (i, kk)),
                pl.BlockSpec((tm, tk), lambda i, j, kk: (i, kk)),
                pl.BlockSpec((tm, tk), lambda i, j, kk: (i, kk)),
                pl.BlockSpec((tk, tn), lambda i, j, kk: (kk, j)),
                pl.BlockSpec((tk, tn), lambda i, j, kk: (kk, j)),
                pl.BlockSpec((tk, tn), lambda i, j, kk: (kk, j)),
            ],
            out_specs=[
                pl.BlockSpec((tm, tn), lambda i, j, kk: (i, j)),
                pl.BlockSpec((tm, tn), lambda i, j, kk: (i, j)),
                pl.BlockSpec((tm, tn), lambda i, j, kk: (i, j)),
            ],
            scratch_shapes=[
                pltpu.VMEM((tm, tn), jnp.float32),
                pltpu.VMEM((tm, tn), jnp.float32),
                pltpu.VMEM((tm, tn), jnp.float32),
            ],
        ),
        compiler_params=pltpu.CompilerParams(
            dimension_semantics=("parallel", "parallel", "arbitrary"),
            vmem_limit_bytes=vmem_limit,
        ),
        cost_estimate=cost,
    )(xk, xv, xq, wk_t, wv_t, wq_t)

    if Mp != M:
        yk, yv, yq = yk[:M], yv[:M], yq[:M]
    return yk, yv, yq


# ----------------------------------------------------------------------------
# Kernel B: flash-style multi-head attention + fused output projection
# ----------------------------------------------------------------------------
def _flash_mha_kernel(q_ref, k_ref, v_ref, w_ref, o_ref,
                      m_ref, l_ref, acc_ref, *, n_heads, head_dim):
    ki = pl.program_id(2)

    @pl.when(ki == 0)
    def _init():
        m_ref[...] = jnp.full_like(m_ref, -jnp.inf)
        l_ref[...] = jnp.zeros_like(l_ref)
        acc_ref[...] = jnp.zeros_like(acc_ref)

    q = q_ref[0]   # (tq,  H*dh)  head-column layout
    k = k_ref[0]   # (tkv, H*dh)
    v = v_ref[0]   # (tkv, H*dh)

    for h in range(n_heads):
        sl = slice(h * head_dim, (h + 1) * head_dim)
        qh, kh, vh = q[:, sl], k[:, sl], v[:, sl]
        # Scores: q_h @ k_h^T (1/sqrt(d) scale already folded into Wq at init).
        s = lax.dot_general(qh, kh, (((1,), (1,)), ((), ())),
                            preferred_element_type=jnp.float32)      # (tq, tkv)
        m_prev = m_ref[h]                                            # (tq, 1)
        m_new = jnp.maximum(m_prev, s.max(axis=-1, keepdims=True))
        alpha = jnp.exp(m_prev - m_new)
        p = jnp.exp(s - m_new)
        l_ref[h] = alpha * l_ref[h] + p.sum(axis=-1, keepdims=True)
        acc_ref[h] = alpha * acc_ref[h] + jnp.dot(
            p.astype(vh.dtype), vh, preferred_element_type=jnp.float32)
        m_ref[h] = m_new

    @pl.when(ki == pl.num_programs(2) - 1)
    def _finalize():
        # Normalize each head (EUP approx reciprocal), assemble the lane-dense
        # head-major slab, and apply the fused output projection in-kernel.
        heads = [acc_ref[h] * pl.reciprocal(l_ref[h], approx=True)
                 for h in range(n_heads)]
        slab = jnp.concatenate(heads, axis=-1).astype(w_ref.dtype)   # (tq, H*dh)
        y = jnp.dot(slab, w_ref[...], preferred_element_type=jnp.float32)
        o_ref[0] = y.astype(o_ref.dtype)


def flash_mha_with_output_proj(q_proj, k_proj, v_proj, w_out, *, n_heads,
                               out_dtype=None):
    """q/k/v_proj: (B, n, H*hidden) head-column projections.
    w_out: (H*hidden, hidden_out) pre-permuted output-projection weight.
    Returns (B, n, hidden_out)."""
    B, n, HD = q_proj.shape
    HDw, hidden_out = w_out.shape
    assert HD == HDw and HD % n_heads == 0
    dh = HD // n_heads
    out_dtype = out_dtype or q_proj.dtype

    tq = _pick_seq_tile(n, 512)
    tkv = _pick_seq_tile(n, 512)
    grid = (B, n // tq, n // tkv)

    itemsize = jnp.dtype(q_proj.dtype).itemsize
    vmem_limit = _clamp_vmem(
        2 * (tq * HD + 2 * tkv * HD + tq * hidden_out) * itemsize  # dbl-buffered q/k/v/out
        + HD * hidden_out * jnp.dtype(w_out.dtype).itemsize        # resident w_out
        + n_heads * tq * (2 + dh) * 4                              # m, l, acc scratch
        + (4 << 20))

    cost = pl.CostEstimate(
        flops=4 * B * n * n * HD + 2 * B * n * HD * hidden_out,
        transcendentals=B * n_heads * n * n,
        bytes_accessed=(3 * B * n * HD + HD * hidden_out
                        + B * n * hidden_out) * itemsize,
    )

    kernel = functools.partial(_flash_mha_kernel, n_heads=n_heads, head_dim=dh)
    return pl.pallas_call(
        kernel,
        out_shape=jax.ShapeDtypeStruct((B, n, hidden_out), out_dtype),
        grid_spec=pltpu.PrefetchScalarGridSpec(
            num_scalar_prefetch=0,
            grid=grid,
            in_specs=[
                pl.BlockSpec((1, tq, HD), lambda b, qi, ki: (b, qi, 0)),
                pl.BlockSpec((1, tkv, HD), lambda b, qi, ki: (b, ki, 0)),
                pl.BlockSpec((1, tkv, HD), lambda b, qi, ki: (b, ki, 0)),
                pl.BlockSpec((HD, hidden_out), lambda b, qi, ki: (0, 0)),
            ],
            out_specs=pl.BlockSpec((1, tq, hidden_out),
                                   lambda b, qi, ki: (b, qi, 0)),
            scratch_shapes=[
                pltpu.VMEM((n_heads, tq, 1), jnp.float32),   # m
                pltpu.VMEM((n_heads, tq, 1), jnp.float32),   # l
                pltpu.VMEM((n_heads, tq, dh), jnp.float32),  # acc
            ],
        ),
        compiler_params=pltpu.CompilerParams(
            dimension_semantics=("parallel", "parallel", "arbitrary"),
            vmem_limit_bytes=vmem_limit,
        ),
        cost_estimate=cost,
    )(q_proj, k_proj, v_proj, w_out)


# ----------------------------------------------------------------------------
# Parameter preparation (one-time, at init) + forward
# ----------------------------------------------------------------------------
def prepare_params(wk_heads, wv_heads, wq_heads, w_out_t):
    """One-time parameter-layout transforms (init-time, NOT per forward):
      * fuse the per-head (hidden, hidden) projection weights into a single
        (hidden, n_heads*hidden) matrix (head h -> columns [h*d, (h+1)*d));
      * fold the 1/sqrt(hidden) attention scale into Wq;
      * fold torch's stack(dim=-1) feature interleave (row f = d*H + h) into a
        row permutation of the output-projection weight, so the kernel can emit
        head-major (h*d + d) output directly.
    Weights here are already in (in, out) layout; a real PyTorch AttnLinear
    checkpoint stores (out, in) and needs a one-time transpose at load."""
    H, hidden, _ = wq_heads.shape

    def fuse(w_heads):  # (H, in, out) -> (in, H*out)
        return jnp.transpose(w_heads, (1, 0, 2)).reshape(hidden, H * hidden)

    wq_scaled = wq_heads * (hidden ** (-0.5))
    w_out_perm = (w_out_t.reshape(hidden, H, w_out_t.shape[-1])
                  .transpose(1, 0, 2)
                  .reshape(H * hidden, w_out_t.shape[-1]))
    return dict(wk_t=fuse(wk_heads), wv_t=fuse(wv_heads),
                wq_t=fuse(wq_scaled), w_out_t=w_out_perm)


def multihead_attention(k, v, q, wk_t, wv_t, wq_t, w_out_t, *, n_heads):
    """Attention._multihead_attention forward (attention_type='multihead')."""
    B, n, hidden = q.shape
    HD = wq_t.shape[1]
    M = B * n
    kp, vp, qp = fused_projections(
        k.reshape(M, hidden), v.reshape(M, hidden), q.reshape(M, hidden),
        wk_t, wv_t, wq_t)
    kp = kp.reshape(B, n, HD)
    vp = vp.reshape(B, n, HD)
    qp = qp.reshape(B, n, HD)
    return flash_mha_with_output_proj(qp, kp, vp, w_out_t, n_heads=n_heads,
                                      out_dtype=q.dtype)


# ----------------------------------------------------------------------------
# Demo + reference check
# ----------------------------------------------------------------------------
if __name__ == "__main__":
    batch, seq, hidden, n_heads = 2, 8, 32, 8

    key = jax.random.PRNGKey(0)
    kk_, kv_, kq_, k1, k2, k3, k4 = jax.random.split(key, 7)

    k_in = jax.random.normal(kk_, (batch, seq, hidden), dtype=jnp.float32)
    v_in = jax.random.normal(kv_, (batch, seq, hidden), dtype=jnp.float32)
    q_in = jax.random.normal(kq_, (batch, seq, hidden), dtype=jnp.float32)

    # AttnLinear init: normal with std = in_channels ** -0.5, (in, out) layout.
    std = hidden ** (-0.5)
    wk_heads = jax.random.normal(k1, (n_heads, hidden, hidden), jnp.float32) * std
    wv_heads = jax.random.normal(k2, (n_heads, hidden, hidden), jnp.float32) * std
    wq_heads = jax.random.normal(k3, (n_heads, hidden, hidden), jnp.float32) * std
    # Output AttnLinear weight, rows in torch's stack(dim=-1) order (f = d*H + h).
    w_out_t = jax.random.normal(k4, (n_heads * hidden, hidden), jnp.float32) * (
        (n_heads * hidden) ** (-0.5))

    params = prepare_params(wk_heads, wv_heads, wq_heads, w_out_t)

    # Sanity check of the fused projection kernel on its own.
    kp, _, _ = fused_projections(
        k_in.reshape(-1, hidden), v_in.reshape(-1, hidden),
        q_in.reshape(-1, hidden), params["wk_t"], params["wv_t"], params["wq_t"])
    kp_ref = k_in.reshape(-1, hidden) @ params["wk_t"]
    assert jnp.allclose(kp, kp_ref, atol=1e-4, rtol=1e-4)

    # Full multihead-attention forward via the two Pallas kernels.
    fwd = jax.jit(multihead_attention, static_argnames=("n_heads",))
    rep = fwd(k_in, v_in, q_in, params["wk_t"], params["wv_t"],
              params["wq_t"], params["w_out_t"], n_heads=n_heads)
    jax.block_until_ready(rep)

    # Pure-JAX reference mirroring the PyTorch module math.
    def reference(k, v, q):
        outs = []
        for h in range(n_heads):
            k_ = k @ wk_heads[h]
            v_ = v @ wv_heads[h]
            q_ = q @ wq_heads[h]
            scale = q_.shape[-1] ** 0.5
            unnorm = jnp.einsum("bjk,bik->bij", k_, q_) / scale
            w = jax.nn.softmax(unnorm, axis=-1)
            outs.append(jnp.einsum("bik,bkj->bij", w, v_))
        outs = jnp.stack(outs, axis=-1).reshape(batch, seq, -1)
        return outs @ w_out_t

    rep_ref = reference(k_in, v_in, q_in)
    assert rep.shape == (batch, seq, hidden)
    err = float(jnp.max(jnp.abs(rep - rep_ref)))
    # Slightly looser tolerance than exact-divide: softmax normalization uses
    # the EUP approximate reciprocal (pl.reciprocal(approx=True)).
    assert jnp.allclose(rep, rep_ref, atol=5e-3, rtol=5e-3), err

    print("KERNEL_OK")
</pallas_src>

<mosaic_0001>
module attributes {stable_mosaic.version = 11 : i64} {
  func.func @_proj_kernel(%arg0: i32, %arg1: i32, %arg2: i32, %arg3: memref<16x32xf32, #tpu.memory_space<vmem>>, %arg4: memref<16x32xf32, #tpu.memory_space<vmem>>, %arg5: memref<16x32xf32, #tpu.memory_space<vmem>>, %arg6: memref<32x256xf32, #tpu.memory_space<vmem>>, %arg7: memref<32x256xf32, #tpu.memory_space<vmem>>, %arg8: memref<32x256xf32, #tpu.memory_space<vmem>>, %arg9: memref<16x256xf32, #tpu.memory_space<vmem>>, %arg10: memref<16x256xf32, #tpu.memory_space<vmem>>, %arg11: memref<16x256xf32, #tpu.memory_space<vmem>>, %arg12: memref<16x256xf32, #tpu.memory_space<vmem>>, %arg13: memref<16x256xf32, #tpu.memory_space<vmem>>, %arg14: memref<16x256xf32, #tpu.memory_space<vmem>>) attributes {dimension_semantics = [#tpu.dimension_semantics<parallel>, #tpu.dimension_semantics<parallel>, #tpu.dimension_semantics<arbitrary>], iteration_bounds = array<i64: 1, 1, 1>, scalar_prefetch = 0 : i64, scratch_operands = 3 : i64, tpu.core_type = #tpu.core_type<tc>, window_params = [{transform_indices = @transform_0, window_bounds = array<i64: 16, 32>}, {transform_indices = @transform_1, window_bounds = array<i64: 16, 32>}, {transform_indices = @transform_2, window_bounds = array<i64: 16, 32>}, {transform_indices = @transform_3, window_bounds = array<i64: 32, 256>}, {transform_indices = @transform_4, window_bounds = array<i64: 32, 256>}, {transform_indices = @transform_5, window_bounds = array<i64: 32, 256>}, {transform_indices = @transform_6, window_bounds = array<i64: 16, 256>}, {transform_indices = @transform_7, window_bounds = array<i64: 16, 256>}, {transform_indices = @transform_8, window_bounds = array<i64: 16, 256>}]} {
    %c0_i32 = arith.constant 0 : i32
    %0 = arith.cmpi eq, %arg2, %c0_i32 : i32
    %1 = arith.extui %0 : i1 to i32
    %c0_i32_0 = arith.constant 0 : i32
    %2 = arith.cmpi ne, %1, %c0_i32_0 : i32
    scf.if %2 {
      %cst_28 = arith.constant 0.000000e+00 : f32
      %24 = vector.broadcast %cst_28 : f32 to vector<16x256xf32>
      %c0_29 = arith.constant 0 : index
      %c0_30 = arith.constant 0 : index
      %25 = vector.load %arg12[%c0_29, %c0_30] : memref<16x256xf32, #tpu.memory_space<vmem>>, vector<16x256xf32>
      tpu.vector_store %arg12[%c0_29, %c0_30], %24 {strides = array<i32>} : memref<16x256xf32, #tpu.memory_space<vmem>>, vector<16x256xf32>,
      %cst_31 = arith.constant 0.000000e+00 : f32
      %26 = vector.broadcast %cst_31 : f32 to vector<16x256xf32>
      %c0_32 = arith.constant 0 : index
      %c0_33 = arith.constant 0 : index
      %27 = vector.load %arg13[%c0_32, %c0_33] : memref<16x256xf32, #tpu.memory_space<vmem>>, vector<16x256xf32>
      tpu.vector_store %arg13[%c0_32, %c0_33], %26 {strides = array<i32>} : memref<16x256xf32, #tpu.memory_space<vmem>>, vector<16x256xf32>,
      %cst_34 = arith.constant 0.000000e+00 : f32
      %28 = vector.broadcast %cst_34 : f32 to vector<16x256xf32>
      %c0_35 = arith.constant 0 : index
      %c0_36 = arith.constant 0 : index
      %29 = vector.load %arg14[%c0_35, %c0_36] : memref<16x256xf32, #tpu.memory_space<vmem>>, vector<16x256xf32>
      tpu.vector_store %arg14[%c0_35, %c0_36], %28 {strides = array<i32>} : memref<16x256xf32, #tpu.memory_space<vmem>>, vector<16x256xf32>,
    } else {
    }
    %c0 = arith.constant 0 : index
    %c0_1 = arith.constant 0 : index
    %3 = vector.load %arg12[%c0, %c0_1] : memref<16x256xf32, #tpu.memory_space<vmem>>, vector<16x256xf32>
    %c0_2 = arith.constant 0 : index
    %c0_3 = arith.constant 0 : index
    %4 = vector.load %arg3[%c0_2, %c0_3] : memref<16x32xf32, #tpu.memory_space<vmem>>, vector<16x32xf32>
    %c0_4 = arith.constant 0 : index
    %c0_5 = arith.constant 0 : index
    %5 = vector.load %arg6[%c0_4, %c0_5] : memref<32x256xf32, #tpu.memory_space<vmem>>, vector<32x256xf32>
    %cst = arith.constant dense<0.000000e+00> : vector<16x256xf32>
    %6 = tpu.matmul %4, %5, %cst {dimension_numbers = #tpu.dot_dimension_numbers<[1], [0], [0], [1], [0, 0, 1, 1], [], []>} : vector<16x32xf32>, vector<32x256xf32>, vector<16x256xf32> -> vector<16x256xf32>
    %7 = arith.addf %3, %6 : vector<16x256xf32>
    %c0_6 = arith.constant 0 : index
    %c0_7 = arith.constant 0 : index
    %8 = vector.load %arg12[%c0_6, %c0_7] : memref<16x256xf32, #tpu.memory_space<vmem>>, vector<16x256xf32>
    tpu.vector_store %arg12[%c0_6, %c0_7], %7 {strides = array<i32>} : memref<16x256xf32, #tpu.memory_space<vmem>>, vector<16x256xf32>,
    %c0_8 = arith.constant 0 : index
    %c0_9 = arith.constant 0 : index
    %9 = vector.load %arg13[%c0_8, %c0_9] : memref<16x256xf32, #tpu.memory_space<vmem>>, vector<16x256xf32>
    %c0_10 = arith.constant 0 : index
    %c0_11 = arith.constant 0 : index
    %10 = vector.load %arg4[%c0_10, %c0_11] : memref<16x32xf32, #tpu.memory_space<vmem>>, vector<16x32xf32>
    %c0_12 = arith.constant 0 : index
    %c0_13 = arith.constant 0 : index
    %11 = vector.load %arg7[%c0_12, %c0_13] : memref<32x256xf32, #tpu.memory_space<vmem>>, vector<32x256xf32>
    %cst_14 = arith.constant dense<0.000000e+00> : vector<16x256xf32>
    %12 = tpu.matmul %10, %11, %cst_14 {dimension_numbers = #tpu.dot_dimension_numbers<[1], [0], [0], [1], [0, 0, 1, 1], [], []>} : vector<16x32xf32>, vector<32x256xf32>, vector<16x256xf32> -> vector<16x256xf32>
    %13 = arith.addf %9, %12 : vector<16x256xf32>
    %c0_15 = arith.constant 0 : index
    %c0_16 = arith.constant 0 : index
    %14 = vector.load %arg13[%c0_15, %c0_16] : memref<16x256xf32, #tpu.memory_space<vmem>>, vector<16x256xf32>
    tpu.vector_store %arg13[%c0_15, %c0_16], %13 {strides = array<i32>} : memref<16x256xf32, #tpu.memory_space<vmem>>, vector<16x256xf32>,
    %c0_17 = arith.constant 0 : index
    %c0_18 = arith.constant 0 : index
    %15 = vector.load %arg14[%c0_17, %c0_18] : memref<16x256xf32, #tpu.memory_space<vmem>>, vector<16x256xf32>
    %c0_19 = arith.constant 0 : index
    %c0_20 = arith.constant 0 : index
    %16 = vector.load %arg5[%c0_19, %c0_20] : memref<16x32xf32, #tpu.memory_space<vmem>>, vector<16x32xf32>
    %c0_21 = arith.constant 0 : index
    %c0_22 = arith.constant 0 : index
    %17 = vector.load %arg8[%c0_21, %c0_22] : memref<32x256xf32, #tpu.memory_space<vmem>>, vector<32x256xf32>
    %cst_23 = arith.constant dense<0.000000e+00> : vector<16x256xf32>
    %18 = tpu.matmul %16, %17, %cst_23 {dimension_numbers = #tpu.dot_dimension_numbers<[1], [0], [0], [1], [0, 0, 1, 1], [], []>} : vector<16x32xf32>, vector<32x256xf32>, vector<16x256xf32> -> vector<16x256xf32>
    %19 = arith.addf %15, %18 : vector<16x256xf32>
    %c0_24 = arith.constant 0 : index
    %c0_25 = arith.constant 0 : index
    %20 = vector.load %arg14[%c0_24, %c0_25] : memref<16x256xf32, #tpu.memory_space<vmem>>, vector<16x256xf32>
    tpu.vector_store %arg14[%c0_24, %c0_25], %19 {strides = array<i32>} : memref<16x256xf32, #tpu.memory_space<vmem>>, vector<16x256xf32>,
    %c0_i32_26 = arith.constant 0 : i32
    %21 = arith.cmpi eq, %arg2, %c0_i32_26 : i32
    %22 = arith.extui %21 : i1 to i32
    %c0_i32_27 = arith.constant 0 : i32
    %23 = arith.cmpi ne, %22, %c0_i32_27 : i32
    scf.if %23 {
      %c0_28 = arith.constant 0 : index
      %c0_29 = arith.constant 0 : index
      %24 = vector.load %arg12[%c0_28, %c0_29] : memref<16x256xf32, #tpu.memory_space<vmem>>, vector<16x256xf32>
      %c0_30 = arith.constant 0 : index
      %c0_31 = arith.constant 0 : index
      %25 = vector.load %arg9[%c0_30, %c0_31] : memref<16x256xf32, #tpu.memory_space<vmem>>, vector<16x256xf32>
      tpu.vector_store %arg9[%c0_30, %c0_31], %24 {strides = array<i32>} : memref<16x256xf32, #tpu.memory_space<vmem>>, vector<16x256xf32>,
      %c0_32 = arith.constant 0 : index
      %c0_33 = arith.constant 0 : index
      %26 = vector.load %arg13[%c0_32, %c0_33] : memref<16x256xf32, #tpu.memory_space<vmem>>, vector<16x256xf32>
      %c0_34 = arith.constant 0 : index
      %c0_35 = arith.constant 0 : index
      %27 = vector.load %arg10[%c0_34, %c0_35] : memref<16x256xf32, #tpu.memory_space<vmem>>, vector<16x256xf32>
      tpu.vector_store %arg10[%c0_34, %c0_35], %26 {strides = array<i32>} : memref<16x256xf32, #tpu.memory_space<vmem>>, vector<16x256xf32>,
      %c0_36 = arith.constant 0 : index
      %c0_37 = arith.constant 0 : index
      %28 = vector.load %arg14[%c0_36, %c0_37] : memref<16x256xf32, #tpu.memory_space<vmem>>, vector<16x256xf32>
      %c0_38 = arith.constant 0 : index
      %c0_39 = arith.constant 0 : index
      %29 = vector.load %arg11[%c0_38, %c0_39] : memref<16x256xf32, #tpu.memory_space<vmem>>, vector<16x256xf32>
      tpu.vector_store %arg11[%c0_38, %c0_39], %28 {strides = array<i32>} : memref<16x256xf32, #tpu.memory_space<vmem>>, vector<16x256xf32>,
    } else {
    }
    return
  }
  func.func @transform_0(%arg0: i32, %arg1: i32, %arg2: i32) -> (i32, i32) {
    %c0_i32 = arith.constant 0 : i32
    return %arg0, %arg2 : i32, i32
  }
  func.func @transform_1(%arg0: i32, %arg1: i32, %arg2: i32) -> (i32, i32) {
    %c0_i32 = arith.constant 0 : i32
    return %arg0, %arg2 : i32, i32
  }
  func.func @transform_2(%arg0: i32, %arg1: i32, %arg2: i32) -> (i32, i32) {
    %c0_i32 = arith.constant 0 : i32
    return %arg0, %arg2 : i32, i32
  }
  func.func @transform_3(%arg0: i32, %arg1: i32, %arg2: i32) -> (i32, i32) {
    %c0_i32 = arith.constant 0 : i32
    return %arg2, %arg1 : i32, i32
  }
  func.func @transform_4(%arg0: i32, %arg1: i32, %arg2: i32) -> (i32, i32) {
    %c0_i32 = arith.constant 0 : i32
    return %arg2, %arg1 : i32, i32
  }
  func.func @transform_5(%arg0: i32, %arg1: i32, %arg2: i32) -> (i32, i32) {
    %c0_i32 = arith.constant 0 : i32
    return %arg2, %arg1 : i32, i32
  }
  func.func @transform_6(%arg0: i32, %arg1: i32, %arg2: i32) -> (i32, i32) {
    %c0_i32 = arith.constant 0 : i32
    return %arg0, %arg1 : i32, i32
  }
  func.func @transform_7(%arg0: i32, %arg1: i32, %arg2: i32) -> (i32, i32) {
    %c0_i32 = arith.constant 0 : i32
    return %arg0, %arg1 : i32, i32
  }
  func.func @transform_8(%arg0: i32, %arg1: i32, %arg2: i32) -> (i32, i32) {
    %c0_i32 = arith.constant 0 : i32
    return %arg0, %arg1 : i32, i32
  }
}

</mosaic_0001>

<llo_original>
// kernel: tpu_custom_call.1
$region0: #{tpu_custom_call.1}
  #allocation0 [shape = 'u32[]', space=smem, size = 0x4, offset = 0x4, fixed_abs, tag = 'smem constant byte address 0x4 - core index']
  #allocation1 [shape = 'u32[144,128]{1,0:T(1,128)}', space=vmem, size = 0x12000, scoped, tag = 'internal scratch']
  #allocation2 [shape = 'f32[16,256]{1,0:T(8,128)}', space=vmem, size = 0x4000, scoped, tag = 'scratch operand']
  #allocation3 [shape = 'f32[16,256]{1,0:T(8,128)}', space=vmem, size = 0x4000, scoped, tag = 'scratch operand']
  #allocation4 [shape = 'f32[16,256]{1,0:T(8,128)}', space=vmem, size = 0x4000, scoped, tag = 'scratch operand']
  %s0 = inlined_call_operand.hbm [shape: f32[16,32], index: 0, kind: input, shape index: {}]
  %s1 = inlined_call_operand.hbm [shape: f32[16,32], index: 1, kind: input, shape index: {}]
  %s2 = inlined_call_operand.hbm [shape: f32[16,32], index: 2, kind: input, shape index: {}]
  %s3 = inlined_call_operand.hbm [shape: f32[32,256], index: 3, kind: input, shape index: {}]
  %s4 = inlined_call_operand.hbm [shape: f32[32,256], index: 4, kind: input, shape index: {}]
  %s5 = inlined_call_operand.hbm [shape: f32[32,256], index: 5, kind: input, shape index: {}]
  %s6 = inlined_call_operand.hbm [shape: f32[16,256], index: 6, kind: output, shape index: {0}]
  %s7 = inlined_call_operand.hbm [shape: f32[16,256], index: 7, kind: output, shape index: {1}]
  %s8 = inlined_call_operand.hbm [shape: f32[16,256], index: 8, kind: output, shape index: {2}]
  %9 = xla_tuple %s6, %s7, %s8
  %s10 = sld [smem:[#allocation0]]
  $region82: #{tpu_custom_call.1} parent=0
    _
  %s12 = ssub.s32 1, %s10
  %s13 = scalar_select 0, %s12, %s10
  $region1: #{tpu_custom_call.1} parent=0
    #allocation5 [shape = 'u8[8192]{0}', space=vmem, size = 0x2000, scoped, tag = 'input window, operand 0, single buffered']
    #allocation6 [shape = 's32[1]{0}', space=sflag, size = 0x4, scoped, tag = 'scoped memory for tpu_custom_call.1']
    #allocation7 [shape = 's32[1]{0}', space=sflag, size = 0x4, scoped, tag = 'scoped memory for tpu_custom_call.1']
    #allocation8 [shape = 'u8[8192]{0}', space=vmem, size = 0x2000, scoped, tag = 'input window, operand 1, single buffered']
    #allocation9 [shape = 's32[1]{0}', space=sflag, size = 0x4, scoped, tag = 'scoped memory for tpu_custom_call.1']
    #allocation10 [shape = 'u8[8192]{0}', space=vmem, size = 0x2000, scoped, tag = 'input window, operand 2, single buffered']
    #allocation11 [shape = 'u8[32768]{0}', space=vmem, size = 0x8000, scoped, tag = 'input window, operand 3, single buffered']
    #allocation12 [shape = 's32[1]{0}', space=sflag, size = 0x4, scoped, tag = 'scoped memory for tpu_custom_call.1']
    #allocation13 [shape = 'u8[32768]{0}', space=vmem, size = 0x8000, scoped, tag = 'input window, operand 4, single buffered']
    #allocation14 [shape = 'u8[32768]{0}', space=vmem, size = 0x8000, scoped, tag = 'input window, operand 5, single buffered']
    #allocation15 [shape = 's32[1]{0}', space=sflag, size = 0x4, scoped, tag = 'scoped memory for tpu_custom_call.1']
    #allocation16 [shape = 'u8[16384]{0}', space=vmem, size = 0x4000, scoped, tag = 'output window, operand 0, single buffered']
    #allocation17 [shape = 'u8[16384]{0}', space=vmem, size = 0x4000, scoped, tag = 'output window, operand 1, single buffered']
    #allocation18 [shape = 's32[1]{0}', space=sflag, size = 0x4, scoped, tag = 'scoped memory for tpu_custom_call.1']
    #allocation19 [shape = 'u8[16384]{0}', space=vmem, size = 0x4000, scoped, tag = 'output window, operand 2, single buffered']
    %14 = vsyncpa [#allocation6], 0
    %15 = vsyncpa [#allocation9], 0
    %16 = vsyncpa [#allocation12], 0
    %17 = vsyncpa [#allocation15], 0
    %18 = vsyncpa [#allocation7], 0
    %19 = vsyncpa [#allocation18], 0
    // Predicated region
    $region2: #{tpu_custom_call.1} parent=1 // pred_check
      _
    $region3: #{tpu_custom_call.1} parent=1 // pred_check_branch
      %21 = sbr.rel (0) target = $region5
    $region4: #{tpu_custom_call.1} parent=1 // pred_region
      %s23 = ssub.s32 256, 256
      %24 = vsyncadd [#allocation6], %s23
      %s25 = sshll.u32 [#allocation5], 4
      %s26 = int_to_ptr.vmem [resolvable:$true] %s25
      %31 = dma.hbm_to_vmem [thread:$0]  %s0, 256, %s26, [#allocation6], 128, 128, 8
    $region5: #{tpu_custom_call.1} parent=1 // pred_fallthru
      _
    // Predicated region
    $region6: #{tpu_custom_call.1} parent=1 // pred_check
      _
    $region7: #{tpu_custom_call.1} parent=1 // pred_check_branch
      %33 = sbr.rel (0) target = $region9
    $region8: #{tpu_custom_call.1} parent=1 // pred_region
      %s35 = ssub.s32 256, 256
      %36 = vsyncadd [#allocation9], %s35
      %s37 = sshll.u32 [#allocation8], 4
      %s38 = int_to_ptr.vmem [resolvable:$true] %s37
      %43 = dma.hbm_to_vmem [thread:$0]  %s1, 256, %s38, [#allocation9], 128, 128, 8
    $region9: #{tpu_custom_call.1} parent=1 // pred_fallthru
      _
    // Predicated region
    $region10: #{tpu_custom_call.1} parent=1 // pred_check
      _
    $region11: #{tpu_custom_call.1} parent=1 // pred_check_branch
      %45 = sbr.rel (0) target = $region13
    $region12: #{tpu_custom_call.1} parent=1 // pred_region
      %s47 = ssub.s32 256, 256
      %48 = vsyncadd [#allocation9], %s47
      %s49 = sshll.u32 [#allocation10], 4
      %s50 = int_to_ptr.vmem [resolvable:$true] %s49
      %55 = dma.hbm_to_vmem [thread:$0]  %s2, 256, %s50, [#allocation9], 128, 128, 8
    $region13: #{tpu_custom_call.1} parent=1 // pred_fallthru
      _
    // Predicated region
    $region14: #{tpu_custom_call.1} parent=1 // pred_check
      _
    $region15: #{tpu_custom_call.1} parent=1 // pred_check_branch
      %57 = sbr.rel (0) target = $region17
    $region16: #{tpu_custom_call.1} parent=1 // pred_region
      %s59 = ssub.s32 1024, 1024
      %60 = vsyncadd [#allocation12], %s59
      %s61 = sshll.u32 [#allocation11], 4
      %s62 = int_to_ptr.vmem [resolvable:$true] %s61
      %67 = dma.hbm_to_vmem [thread:$0]  %s3, 1024, %s62, [#allocation12], 256, 256, 16
    $region17: #{tpu_custom_call.1} parent=1 // pred_fallthru
      _
    // Predicated region
    $region18: #{tpu_custom_call.1} parent=1 // pred_check
      _
    $region19: #{tpu_custom_call.1} parent=1 // pred_check_branch
      %69 = sbr.rel (0) target = $region21
    $region20: #{tpu_custom_call.1} parent=1 // pred_region
      %s71 = ssub.s32 1024, 1024
      %72 = vsyncadd [#allocation12], %s71
      %s73 = sshll.u32 [#allocation13], 4
      %s74 = int_to_ptr.vmem [resolvable:$true] %s73
      %79 = dma.hbm_to_vmem [thread:$0]  %s4, 1024, %s74, [#allocation12], 256, 256, 16
    $region21: #{tpu_custom_call.1} parent=1 // pred_fallthru
      _
    // Predicated region
    $region22: #{tpu_custom_call.1} parent=1 // pred_check
      _
    $region23: #{tpu_custom_call.1} parent=1 // pred_check_branch
      %81 = sbr.rel (0) target = $region25
    $region24: #{tpu_custom_call.1} parent=1 // pred_region
      %s83 = ssub.s32 1024, 1024
      %84 = vsyncadd [#allocation15], %s83
      %s85 = sshll.u32 [#allocation14], 4
      %s86 = int_to_ptr.vmem [resolvable:$true] %s85
      %91 = dma.hbm_to_vmem [thread:$0]  %s5, 1024, %s86, [#allocation15], 256, 256, 16
    $region25: #{tpu_custom_call.1} parent=1 // pred_fallthru
      _
    // Predicated region
    $region26: #{tpu_custom_call.1} parent=1 // pred_check
      _
    $region27: #{tpu_custom_call.1} parent=1 // pred_check_branch
      %93 = sbr.rel (0) target = $region29
    $region28: #{tpu_custom_call.1} parent=1 // pred_region
      %94 = dma.done [#allocation6], 256
    $region29: #{tpu_custom_call.1} parent=1 // pred_fallthru
      _
    // Predicated region
    $region30: #{tpu_custom_call.1} parent=1 // pred_check
      _
    $region31: #{tpu_custom_call.1} parent=1 // pred_check_branch
      %96 = sbr.rel (0) target = $region33
    $region32: #{tpu_custom_call.1} parent=1 // pred_region
      %97 = dma.done [#allocation9], 256
    $region33: #{tpu_custom_call.1} parent=1 // pred_fallthru
      _
    // Predicated region
    $region34: #{tpu_custom_call.1} parent=1 // pred_check
      _
    $region35: #{tpu_custom_call.1} parent=1 // pred_check_branch
      %99 = sbr.rel (0) target = $region37
    $region36: #{tpu_custom_call.1} parent=1 // pred_region
      %100 = dma.done [#allocation9], 256
    $region37: #{tpu_custom_call.1} parent=1 // pred_fallthru
      _
    // Predicated region
    $region38: #{tpu_custom_call.1} parent=1 // pred_check
      _
    $region39: #{tpu_custom_call.1} parent=1 // pred_check_branch
      %102 = sbr.rel (0) target = $region41
    $region40: #{tpu_custom_call.1} parent=1 // pred_region
      %103 = dma.done [#allocation12], 1024
    $region41: #{tpu_custom_call.1} parent=1 // pred_fallthru
      _
    // Predicated region
    $region42: #{tpu_custom_call.1} parent=1 // pred_check
      _
    $region43: #{tpu_custom_call.1} parent=1 // pred_check_branch
      %105 = sbr.rel (0) target = $region45
    $region44: #{tpu_custom_call.1} parent=1 // pred_region
      %106 = dma.done [#allocation12], 1024
    $region45: #{tpu_custom_call.1} parent=1 // pred_fallthru
      _
    // Predicated region
    $region46: #{tpu_custom_call.1} parent=1 // pred_check
      _
    $region47: #{tpu_custom_call.1} parent=1 // pred_check_branch
      %108 = sbr.rel (0) target = $region49
    $region48: #{tpu_custom_call.1} parent=1 // pred_region
      %109 = dma.done [#allocation15], 1024
    $region49: #{tpu_custom_call.1} parent=1 // pred_fallthru
      _
    %p110 = scmp.eq.s32.totalorder 0, 0
    // Predicated region
    $region50: #{tpu_custom_call.1} parent=1 // pred_check
      %p111 = pneg %p110
    $region51: #{tpu_custom_call.1} parent=1 // pred_check_branch
      %113 = sbr.rel (%p111) target = $region53
    $region52: #{tpu_custom_call.1} parent=1 // pred_region
      %114 = vst [vmem:[#allocation2] sm:$0xff] 0.0
      %115 = vst [vmem:[#allocation2 + $0x8] sm:$0xff] 0.0
      %116 = vst [vmem:[#allocation2 + $0x10] sm:$0xff] 0.0
      %117 = vst [vmem:[#allocation2 + $0x18] sm:$0xff] 0.0
      %118 = vst [vmem:[#allocation3] sm:$0xff] 0.0
      %119 = vst [vmem:[#allocation3 + $0x8] sm:$0xff] 0.0
      %120 = vst [vmem:[#allocation3 + $0x10] sm:$0xff] 0.0
      %121 = vst [vmem:[#allocation3 + $0x18] sm:$0xff] 0.0
      %122 = vst [vmem:[#allocation4] sm:$0xff] 0.0
      %123 = vst [vmem:[#allocation4 + $0x8] sm:$0xff] 0.0
      %124 = vst [vmem:[#allocation4 + $0x10] sm:$0xff] 0.0
      %125 = vst [vmem:[#allocation4 + $0x18] sm:$0xff] 0.0
    $region53: #{tpu_custom_call.1} parent=1 // pred_fallthru
      _
    %v126 = vld [vmem:[#allocation2] sm:$0xff]
    %v127 = vld [vmem:[#allocation2 + $0x8] sm:$0xff]
    %v128 = vld [vmem:[#allocation2 + $0x10] sm:$0xff]
    %v129 = vld [vmem:[#allocation2 + $0x18] sm:$0xff]
    %v130 = vld [vmem:[#allocation5] sm:$0xff]
    %v131 = vld [vmem:[#allocation5 + $0x8] sm:$0xff]
    %v132 = vld [vmem:[#allocation11] sm:$0xff]
    %v133 = vld [vmem:[#allocation11 + $0x8] sm:$0xff]
    %v134 = vld [vmem:[#allocation11 + $0x10] sm:$0xff]
    %v135 = vld [vmem:[#allocation11 + $0x18] sm:$0xff]
    %v136 = vld [vmem:[#allocation11 + $0x20] sm:$0xff]
    %v137 = vld [vmem:[#allocation11 + $0x28] sm:$0xff]
    %v138 = vld [vmem:[#allocation11 + $0x30] sm:$0xff]
    %v139 = vld [vmem:[#allocation11 + $0x38] sm:$0xff]
    %vm140 = vcmask 261120
    %v142 = vsel %vm140, %v130, 0
    %v145 = vsel %vm140, %v131, 0
    %147 = vmatprep.subr.mxu0 %v133
    %148 = vmatpush1.msra.mxu0 %v132
    %149 = vmatprep.subr.mxu0 %v135
    %150 = vmatpush1.msra.mxu0 %v134
    %151 = vmatprep.subr.mxu0 %v137
    %152 = vmatpush1.msra.mxu0 %v136
    %153 = vmatprep.subr.mxu0 %v139
    %154 = vmatpush1.msra.mxu0 %v138
    %155 = vmatprep.subr.mxu0 0.0
    %156 = vmatpush1.msra.mxu0 0.0
    %157 = vmatprep.subr.mxu0 0.0
    %158 = vmatpush1.msra.mxu0 0.0
    %159 = vmatprep.subr.mxu0 0.0
    %160 = vmatpush1.msra.mxu0 0.0
    %161 = vmatprep.subr.mxu0 0.0
    %162 = vmatpush1.msra.mxu0 0.0
    %163 = vmatprep.subr.mxu0 0.0
    %164 = vmatpush1.msra.mxu0 0.0
    %165 = vmatprep.subr.mxu0 0.0
    %166 = vmatpush1.msra.mxu0 0.0
    %167 = vmatprep.subr.mxu0 0.0
    %168 = vmatpush1.msra.mxu0 0.0
    %169 = vmatprep.subr.mxu0 0.0
    %170 = vmatpush1.msra.mxu0 0.0
    %171 = vmatprep.subr.mxu0 0.0
    %172 = vmatpush1.msra.mxu0 0.0
    %173 = vmatprep.subr.mxu0 0.0
    %174 = vmatpush1.msra.mxu0 0.0
    %175 = vmatprep.subr.mxu0 0.0
    %176 = vmatpush1.msra.mxu0 0.0
    %177 = vmatprep.subr.mxu0 0.0
    %178 = vmatpush1.msra.mxu0 0.0
    %179 = vmatprep.subr.mxu0 0.0
    %180 = vmatpush1.msra.mxu0 0.0
    %181 = vmatprep.subr.mxu0 0.0
    %182 = vmatpush1.msra.mxu0 0.0
    %183 = vmatprep.subr.mxu0 0.0
    %184 = vmatpush1.msra.mxu0 0.0
    %185 = vmatprep.subr.mxu0 0.0
    %186 = vmatpush1.msra.mxu0 0.0
    %187 = vmatprep.subr.mxu0 0.0
    %188 = vmatpush1.msra.mxu0 0.0
    %189 = vmatprep.subr.mxu0 0.0
    %190 = vmatpush1.msra.mxu0 0.0
    %191 = vmatprep.subr.mxu0 0.0
    %192 = vmatpush1.msra.mxu0 0.0
    %193 = vmatprep.subr.mxu0 0.0
    %194 = vmatpush1.msra.mxu0 0.0
    %195 = vmatprep.subr.mxu0 0.0
    %196 = vmatpush1.msra.mxu0 0.0
    %197 = vmatprep.subr.mxu0 0.0
    %198 = vmatpush1.msra.mxu0 0.0
    %199 = vmatprep.subr.mxu0 0.0
    %200 = vmatpush1.msra.mxu0 0.0
    %201 = vmatprep.subr.mxu0 0.0
    %202 = vmatpush1.msra.mxu0 0.0
    %203 = vmatprep.subr.mxu0 0.0
    %204 = vmatpush1.msra.mxu0 0.0
    %205 = vmatprep.subr.mxu0 0.0
    %206 = vmatpush1.msra.mxu0 0.0
    %207 = vmatprep.subr.mxu0 0.0
    %208 = vmatpush1.msra.mxu0 0.0
    %209 = vmatprep.subr.mxu0 0.0
    %210 = vmatpush1.msra.mxu0 0.0
    %211 = vmatprep.mubr.f32.mxu0 0.0
    %212 = vmatmul.mubr.f32.gmra.mrb[0].mxu0 %v142
    %v213 = vpop.f32.mrb[0].mxu0
    %v214 = vadd.f32 0.0, %v213
    %v215 = vpop.f32.mrb[0].mxu0
    %v216 = vadd.f32 0.0, %v215
    %217 = vmatprep.mubr.f32.mxu0 0.0
    %218 = vmatmul.mubr.f32.gmra.mrb[0].mxu0 %v145
    %v219 = vpop.f32.mrb[0].mxu0
    %v220 = vadd.f32 0.0, %v219
    %v221 = vpop.f32.mrb[0].mxu0
    %v222 = vadd.f32 0.0, %v221
    %223 = vdwg.mxu0
    %v224 = vadd.f32 %v126, %v214
    %v225 = vadd.f32 %v127, %v216
    %v226 = vadd.f32 %v128, %v220
    %v227 = vadd.f32 %v129, %v222
    %228 = vst [vmem:[#allocation2] sm:$0xff] %v224
    %229 = vst [vmem:[#allocation2 + $0x8] sm:$0xff] %v225
    %230 = vst [vmem:[#allocation2 + $0x10] sm:$0xff] %v226
    %231 = vst [vmem:[#allocation2 + $0x18] sm:$0xff] %v227
    %v232 = vld [vmem:[#allocation3] sm:$0xff]
    %v233 = vld [vmem:[#allocation3 + $0x8] sm:$0xff]
    %v234 = vld [vmem:[#allocation3 + $0x10] sm:$0xff]
    %v235 = vld [vmem:[#allocation3 + $0x18] sm:$0xff]
    %v236 = vld [vmem:[#allocation8] sm:$0xff]
    %v237 = vld [vmem:[#allocation8 + $0x8] sm:$0xff]
    %v238 = vld [vmem:[#allocation13] sm:$0xff]
    %v239 = vld [vmem:[#allocation13 + $0x8] sm:$0xff]
    %v240 = vld [vmem:[#allocation13 + $0x10] sm:$0xff]
    %v241 = vld [vmem:[#allocation13 + $0x18] sm:$0xff]
    %v242 = vld [vmem:[#allocation13 + $0x20] sm:$0xff]
    %v243 = vld [vmem:[#allocation13 + $0x28] sm:$0xff]
    %v244 = vld [vmem:[#allocation13 + $0x30] sm:$0xff]
    %v245 = vld [vmem:[#allocation13 + $0x38] sm:$0xff]
    %v247 = vsel %vm140, %v236, 0
    %v250 = vsel %vm140, %v237, 0
    %252 = vmatprep.subr.mxu0 %v239
    %253 = vmatpush1.msra.mxu0 %v238
    %254 = vmatprep.subr.mxu0 %v241
    %255 = vmatpush1.msra.mxu0 %v240
    %256 = vmatprep.subr.mxu0 %v243
    %257 = vmatpush1.msra.mxu0 %v242
    %258 = vmatprep.subr.mxu0 %v245
    %259 = vmatpush1.msra.mxu0 %v244
    %260 = vmatprep.subr.mxu0 0.0
    %261 = vmatpush1.msra.mxu0 0.0
    %262 = vmatprep.subr.mxu0 0.0
    %263 = vmatpush1.msra.mxu0 0.0
    %264 = vmatprep.subr.mxu0 0.0
    %265 = vmatpush1.msra.mxu0 0.0
    %266 = vmatprep.subr.mxu0 0.0
    %267 = vmatpush1.msra.mxu0 0.0
    %268 = vmatprep.subr.mxu0 0.0
    %269 = vmatpush1.msra.mxu0 0.0
    %270 = vmatprep.subr.mxu0 0.0
    %271 = vmatpush1.msra.mxu0 0.0
    %272 = vmatprep.subr.mxu0 0.0
    %273 = vmatpush1.msra.mxu0 0.0
    %274 = vmatprep.subr.mxu0 0.0
    %275 = vmatpush1.msra.mxu0 0.0
    %276 = vmatprep.subr.mxu0 0.0
    %277 = vmatpush1.msra.mxu0 0.0
    %278 = vmatprep.subr.mxu0 0.0
    %279 = vmatpush1.msra.mxu0 0.0
    %280 = vmatprep.subr.mxu0 0.0
    %281 = vmatpush1.msra.mxu0 0.0
    %282 = vmatprep.subr.mxu0 0.0
    %283 = vmatpush1.msra.mxu0 0.0
    %284 = vmatprep.subr.mxu0 0.0
    %285 = vmatpush1.msra.mxu0 0.0
    %286 = vmatprep.subr.mxu0 0.0
    %287 = vmatpush1.msra.mxu0 0.0
    %288 = vmatprep.subr.mxu0 0.0
    %289 = vmatpush1.msra.mxu0 0.0
    %290 = vmatprep.subr.mxu0 0.0
    %291 = vmatpush1.msra.mxu0 0.0
    %292 = vmatprep.subr.mxu0 0.0
    %293 = vmatpush1.msra.mxu0 0.0
    %294 = vmatprep.subr.mxu0 0.0
    %295 = vmatpush1.msra.mxu0 0.0
    %296 = vmatprep.subr.mxu0 0.0
    %297 = vmatpush1.msra.mxu0 0.0
    %298 = vmatprep.subr.mxu0 0.0
    %299 = vmatpush1.msra.mxu0 0.0
    %300 = vmatprep.subr.mxu0 0.0
    %301 = vmatpush1.msra.mxu0 0.0
    %302 = vmatprep.subr.mxu0 0.0
    %303 = vmatpush1.msra.mxu0 0.0
    %304 = vmatprep.subr.mxu0 0.0
    %305 = vmatpush1.msra.mxu0 0.0
    %306 = vmatprep.subr.mxu0 0.0
    %307 = vmatpush1.msra.mxu0 0.0
    %308 = vmatprep.subr.mxu0 0.0
    %309 = vmatpush1.msra.mxu0 0.0
    %310 = vmatprep.subr.mxu0 0.0
    %311 = vmatpush1.msra.mxu0 0.0
    %312 = vmatprep.subr.mxu0 0.0
    %313 = vmatpush1.msra.mxu0 0.0
    %314 = vmatprep.subr.mxu0 0.0
    %315 = vmatpush1.msra.mxu0 0.0
    %316 = vmatprep.mubr.f32.mxu0 0.0
    %317 = vmatmul.mubr.f32.gmra.mrb[0].mxu0 %v247
    %v318 = vpop.f32.mrb[0].mxu0
    %v319 = vadd.f32 0.0, %v318
    %v320 = vpop.f32.mrb[0].mxu0
    %v321 = vadd.f32 0.0, %v320
    %322 = vmatprep.mubr.f32.mxu0 0.0
    %323 = vmatmul.mubr.f32.gmra.mrb[0].mxu0 %v250
    %v324 = vpop.f32.mrb[0].mxu0
    %v325 = vadd.f32 0.0, %v324
    %v326 = vpop.f32.mrb[0].mxu0
    %v327 = vadd.f32 0.0, %v326
    %328 = vdwg.mxu0
    %v329 = vadd.f32 %v232, %v319
    %v330 = vadd.f32 %v233, %v321
    %v331 = vadd.f32 %v234, %v325
    %v332 = vadd.f32 %v235, %v327
    %333 = vst [vmem:[#allocation3] sm:$0xff] %v329
    %334 = vst [vmem:[#allocation3 + $0x8] sm:$0xff] %v330
    %335 = vst [vmem:[#allocation3 + $0x10] sm:$0xff] %v331
    %336 = vst [vmem:[#allocation3 + $0x18] sm:$0xff] %v332
    %v337 = vld [vmem:[#allocation4] sm:$0xff]
    %v338 = vld [vmem:[#allocation4 + $0x8] sm:$0xff]
    %v339 = vld [vmem:[#allocation4 + $0x10] sm:$0xff]
    %v340 = vld [vmem:[#allocation4 + $0x18] sm:$0xff]
    %v341 = vld [vmem:[#allocation10] sm:$0xff]
    %v342 = vld [vmem:[#allocation10 + $0x8] sm:$0xff]
    %v343 = vld [vmem:[#allocation14] sm:$0xff]
    %v344 = vld [vmem:[#allocation14 + $0x8] sm:$0xff]
    %v345 = vld [vmem:[#allocation14 + $0x10] sm:$0xff]
    %v346 = vld [vmem:[#allocation14 + $0x18] sm:$0xff]
    %v347 = vld [vmem:[#allocation14 + $0x20] sm:$0xff]
    %v348 = vld [vmem:[#allocation14 + $0x28] sm:$0xff]
    %v349 = vld [vmem:[#allocation14 + $0x30] sm:$0xff]
    %v350 = vld [vmem:[#allocation14 + $0x38] sm:$0xff]
    %v352 = vsel %vm140, %v341, 0
    %v355 = vsel %vm140, %v342, 0
    %357 = vmatprep.subr.mxu0 %v344
    %358 = vmatpush1.msra.mxu0 %v343
    %359 = vmatprep.subr.mxu0 %v346
    %360 = vmatpush1.msra.mxu0 %v345
    %361 = vmatprep.subr.mxu0 %v348
    %362 = vmatpush1.msra.mxu0 %v347
    %363 = vmatprep.subr.mxu0 %v350
    %364 = vmatpush1.msra.mxu0 %v349
    %365 = vmatprep.subr.mxu0 0.0
    %366 = vmatpush1.msra.mxu0 0.0
    %367 = vmatprep.subr.mxu0 0.0
    %368 = vmatpush1.msra.mxu0 0.0
    %369 = vmatprep.subr.mxu0 0.0
    %370 = vmatpush1.msra.mxu0 0.0
    %371 = vmatprep.subr.mxu0 0.0
    %372 = vmatpush1.msra.mxu0 0.0
    %373 = vmatprep.subr.mxu0 0.0
    %374 = vmatpush1.msra.mxu0 0.0
    %375 = vmatprep.subr.mxu0 0.0
    %376 = vmatpush1.msra.mxu0 0.0
    %377 = vmatprep.subr.mxu0 0.0
    %378 = vmatpush1.msra.mxu0 0.0
    %379 = vmatprep.subr.mxu0 0.0
    %380 = vmatpush1.msra.mxu0 0.0
    %381 = vmatprep.subr.mxu0 0.0
    %382 = vmatpush1.msra.mxu0 0.0
    %383 = vmatprep.subr.mxu0 0.0
    %384 = vmatpush1.msra.mxu0 0.0
    %385 = vmatprep.subr.mxu0 0.0
    %386 = vmatpush1.msra.mxu0 0.0
    %387 = vmatprep.subr.mxu0 0.0
    %388 = vmatpush1.msra.mxu0 0.0
    %389 = vmatprep.subr.mxu0 0.0
    %390 = vmatpush1.msra.mxu0 0.0
    %391 = vmatprep.subr.mxu0 0.0
    %392 = vmatpush1.msra.mxu0 0.0
    %393 = vmatprep.subr.mxu0 0.0
    %394 = vmatpush1.msra.mxu0 0.0
    %395 = vmatprep.subr.mxu0 0.0
    %396 = vmatpush1.msra.mxu0 0.0
    %397 = vmatprep.subr.mxu0 0.0
    %398 = vmatpush1.msra.mxu0 0.0
    %399 = vmatprep.subr.mxu0 0.0
    %400 = vmatpush1.msra.mxu0 0.0
    %401 = vmatprep.subr.mxu0 0.0
    %402 = vmatpush1.msra.mxu0 0.0
    %403 = vmatprep.subr.mxu0 0.0
    %404 = vmatpush1.msra.mxu0 0.0
    %405 = vmatprep.subr.mxu0 0.0
    %406 = vmatpush1.msra.mxu0 0.0
    %407 = vmatprep.subr.mxu0 0.0
    %408 = vmatpush1.msra.mxu0 0.0
    %409 = vmatprep.subr.mxu0 0.0
    %410 = vmatpush1.msra.mxu0 0.0
    %411 = vmatprep.subr.mxu0 0.0
    %412 = vmatpush1.msra.mxu0 0.0
    %413 = vmatprep.subr.mxu0 0.0
    %414 = vmatpush1.msra.mxu0 0.0
    %415 = vmatprep.subr.mxu0 0.0
    %416 = vmatpush1.msra.mxu0 0.0
    %417 = vmatprep.subr.mxu0 0.0
    %418 = vmatpush1.msra.mxu0 0.0
    %419 = vmatprep.subr.mxu0 0.0
    %420 = vmatpush1.msra.mxu0 0.0
    %421 = vmatprep.mubr.f32.mxu0 0.0
    %422 = vmatmul.mubr.f32.gmra.mrb[0].mxu0 %v352
    %v423 = vpop.f32.mrb[0].mxu0
    %v424 = vadd.f32 0.0, %v423
    %v425 = vpop.f32.mrb[0].mxu0
    %v426 = vadd.f32 0.0, %v425
    %427 = vmatprep.mubr.f32.mxu0 0.0
    %428 = vmatmul.mubr.f32.gmra.mrb[0].mxu0 %v355
    %v429 = vpop.f32.mrb[0].mxu0
    %v430 = vadd.f32 0.0, %v429
    %v431 = vpop.f32.mrb[0].mxu0
    %v432 = vadd.f32 0.0, %v431
    %433 = vdwg.mxu0
    %v434 = vadd.f32 %v337, %v424
    %v435 = vadd.f32 %v338, %v426
    %v436 = vadd.f32 %v339, %v430
    %v437 = vadd.f32 %v340, %v432
    %438 = vst [vmem:[#allocation4] sm:$0xff] %v434
    %439 = vst [vmem:[#allocation4 + $0x8] sm:$0xff] %v435
    %440 = vst [vmem:[#allocation4 + $0x10] sm:$0xff] %v436
    %441 = vst [vmem:[#allocation4 + $0x18] sm:$0xff] %v437
    // Predicated region
    $region54: #{tpu_custom_call.1} parent=1 // pred_check
      %p442 = pneg %p110
    $region55: #{tpu_custom_call.1} parent=1 // pred_check_branch
      %444 = sbr.rel (%p442) target = $region57
    $region56: #{tpu_custom_call.1} parent=1 // pred_region
      %v445 = vld [vmem:[#allocation2] sm:$0xff]
      %v446 = vld [vmem:[#allocation2 + $0x8] sm:$0xff]
      %v447 = vld [vmem:[#allocation2 + $0x10] sm:$0xff]
      %v448 = vld [vmem:[#allocation2 + $0x18] sm:$0xff]
      %449 = vst [vmem:[#allocation16] sm:$0xff] %v445
      %450 = vst [vmem:[#allocation16 + $0x8] sm:$0xff] %v446
      %451 = vst [vmem:[#allocation16 + $0x10] sm:$0xff] %v447
      %452 = vst [vmem:[#allocation16 + $0x18] sm:$0xff] %v448
      %v453 = vld [vmem:[#allocation3] sm:$0xff]
      %v454 = vld [vmem:[#allocation3 + $0x8] sm:$0xff]
      %v455 = vld [vmem:[#allocation3 + $0x10] sm:$0xff]
      %v456 = vld [vmem:[#allocation3 + $0x18] sm:$0xff]
      %457 = vst [vmem:[#allocation17] sm:$0xff] %v453
      %458 = vst [vmem:[#allocation17 + $0x8] sm:$0xff] %v454
      %459 = vst [vmem:[#allocation17 + $0x10] sm:$0xff] %v455
      %460 = vst [vmem:[#allocation17 + $0x18] sm:$0xff] %v456
      %v461 = vld [vmem:[#allocation4] sm:$0xff]
      %v462 = vld [vmem:[#allocation4 + $0x8] sm:$0xff]
      %v463 = vld [vmem:[#allocation4 + $0x10] sm:$0xff]
      %v464 = vld [vmem:[#allocation4 + $0x18] sm:$0xff]
      %465 = vst [vmem:[#allocation19] sm:$0xff] %v461
      %466 = vst [vmem:[#allocation19 + $0x8] sm:$0xff] %v462
      %467 = vst [vmem:[#allocation19 + $0x10] sm:$0xff] %v463
      %468 = vst [vmem:[#allocation19 + $0x18] sm:$0xff] %v464
    $region57: #{tpu_custom_call.1} parent=1 // pred_fallthru
      _
    // Predicated region
    $region58: #{tpu_custom_call.1} parent=1 // pred_check
      _
    $region59: #{tpu_custom_call.1} parent=1 // pred_check_branch
      %470 = sbr.rel (0) target = $region61
    $region60: #{tpu_custom_call.1} parent=1 // pred_region
      %s472 = ssub.s32 512, 512
      %473 = vsyncadd [#allocation7], %s472
      %s474 = sshll.u32 [#allocation16], 4
      %s475 = int_to_ptr.vmem [resolvable:$true] %s474
      %480 = dma.vmem_to_hbm [thread:$0]  %s475, 512, %s6, [#allocation7], 256, 256, 16
    $region61: #{tpu_custom_call.1} parent=1 // pred_fallthru
      _
    // Predicated region
    $region62: #{tpu_custom_call.1} parent=1 // pred_check
      _
    $region63: #{tpu_custom_call.1} parent=1 // pred_check_branch
      %482 = sbr.rel (0) target = $region65
    $region64: #{tpu_custom_call.1} parent=1 // pred_region
      %s484 = ssub.s32 512, 512
      %485 = vsyncadd [#allocation18], %s484
      %s486 = sshll.u32 [#allocation17], 4
      %s487 = int_to_ptr.vmem [resolvable:$true] %s486
      %492 = dma.vmem_to_hbm [thread:$0]  %s487, 512, %s7, [#allocation18], 256, 256, 16
    $region65: #{tpu_custom_call.1} parent=1 // pred_fallthru
      _
    // Predicated region
    $region66: #{tpu_custom_call.1} parent=1 // pred_check
      _
    $region67: #{tpu_custom_call.1} parent=1 // pred_check_branch
      %494 = sbr.rel (0) target = $region69
    $region68: #{tpu_custom_call.1} parent=1 // pred_region
      %s496 = ssub.s32 512, 512
      %497 = vsyncadd [#allocation18], %s496
      %s498 = sshll.u32 [#allocation19], 4
      %s499 = int_to_ptr.vmem [resolvable:$true] %s498
      %504 = dma.vmem_to_hbm [thread:$0]  %s499, 512, %s8, [#allocation18], 256, 256, 16
    $region69: #{tpu_custom_call.1} parent=1 // pred_fallthru
      _
    // Predicated region
    $region70: #{tpu_custom_call.1} parent=1 // pred_check
      _
    $region71: #{tpu_custom_call.1} parent=1 // pred_check_branch
      %506 = sbr.rel (0) target = $region73
    $region72: #{tpu_custom_call.1} parent=1 // pred_region
      %507 = dma.done [#allocation7], 512
    $region73: #{tpu_custom_call.1} parent=1 // pred_fallthru
      _
    // Predicated region
    $region74: #{tpu_custom_call.1} parent=1 // pred_check
      _
    $region75: #{tpu_custom_call.1} parent=1 // pred_check_branch
      %509 = sbr.rel (0) target = $region77
    $region76: #{tpu_custom_call.1} parent=1 // pred_region
      %510 = dma.done [#allocation18], 512
    $region77: #{tpu_custom_call.1} parent=1 // pred_fallthru
      _
    // Predicated region
    $region78: #{tpu_custom_call.1} parent=1 // pred_check
      _
    $region79: #{tpu_custom_call.1} parent=1 // pred_check_branch
      %512 = sbr.rel (0) target = $region81
    $region80: #{tpu_custom_call.1} parent=1 // pred_region
      %513 = dma.done [#allocation18], 512
    $region81: #{tpu_custom_call.1} parent=1 // pred_fallthru
      _
    %514 = vsyncpa [#allocation6], 1
    %515 = vsyncpa [#allocation9], 1
    %516 = vsyncpa [#allocation12], 1
    %517 = vsyncpa [#allocation15], 1
    %518 = vsyncpa [#allocation7], 1
    %519 = vsyncpa [#allocation18], 1

</llo_original>
